<compile_context>
chip_gen: v7x
topology: tpu7x:2x2x1
jax: 0.10.0
libtpu: 0.0.40
codegen_flags: <defaults>
</compile_context>

<pallas_src>
import jax
import jax.numpy as jnp
from jax.experimental import pallas as pl
from jax.experimental.pallas import tpu as pltpu


def _round_up(x, m):
    return (x + m - 1) // m * m


def _pick_batch_tile(B, cap=1024, gran=16):
    """Batch tile: multiple of 16 (bf16 sublane pack), <= cap, minimal padding,
    and >= 2 grid steps whenever B > 16 (v7x megacore sharding)."""
    if B <= gran:
        return gran
    n_steps = max(2, pl.cdiv(_round_up(B, gran), cap))
    return _round_up(pl.cdiv(B, n_steps), gran)


# ----------------------------- Pallas kernels -----------------------------


def _fused_kernel(x_ref, w1_ref, b1_ref, w2_ref, b2_ref, wh_ref, bh_ref, out_ref):
    # Layer 1: Linear + ReLU  (bf16 MXU operands, f32 accumulate/elementwise)
    h1 = jnp.dot(x_ref[...].astype(jnp.bfloat16), w1_ref[...],
                 preferred_element_type=jnp.float32)
    h1 = jnp.maximum(h1 + b1_ref[...], 0.0)
    # Layer 2: Linear + ReLU
    h2 = jnp.dot(h1.astype(jnp.bfloat16), w2_ref[...],
                 preferred_element_type=jnp.float32)
    h2 = jnp.maximum(h2 + b2_ref[...], 0.0)
    # All heads (expiry | strikes... | execute | value) fused, lane-padded to 128.
    heads = jnp.dot(h2.astype(jnp.bfloat16), wh_ref[...],
                    preferred_element_type=jnp.float32) + bh_ref[...]
    # Single merged output buffer: [features | padded heads].  Both halves are
    # 128-lane aligned static slices -> unmasked stores, one writeback DMA.
    H2 = h2.shape[1]
    out_ref[:, :H2] = h2.astype(out_ref.dtype)
    out_ref[:, H2:] = heads.astype(out_ref.dtype)


def _heads_kernel(feat_ref, wh_ref, bh_ref, out_ref):
    # Fallback path: heads-only linear on externally supplied features.
    out = jnp.dot(feat_ref[...].astype(jnp.bfloat16), wh_ref[...],
                  preferred_element_type=jnp.float32)
    out_ref[...] = (out + bh_ref[...]).astype(out_ref.dtype)


# ----------------------------- jitted wrappers -----------------------------


def _const_spec(shape):
    # Weight / bias blocks: whole array, same block at every grid step.
    return pl.BlockSpec(shape, lambda *args: (0,) * len(shape))


@jax.jit
def forward_fused(x, w1, b1, w2, b2, wh, bh):
    """One pallas_call: x -> merged bf16 [features | padded head logits]."""
    B, obs_dim = x.shape
    H2 = w2.shape[1]
    Np = wh.shape[1]                     # padded head width (multiple of 128)

    TB = _pick_batch_tile(B)
    Bp = _round_up(B, TB)
    if Bp != B:
        x = jnp.pad(x, ((0, Bp - B), (0, 0)))
    grid = (Bp // TB,)

    out = pl.pallas_call(
        _fused_kernel,
        out_shape=jax.ShapeDtypeStruct((Bp, H2 + Np), jnp.bfloat16),
        grid_spec=pltpu.PrefetchScalarGridSpec(
            num_scalar_prefetch=0,
            grid=grid,
            in_specs=[
                pl.BlockSpec((TB, obs_dim), lambda i: (i, 0)),
                _const_spec(w1.shape),
                _const_spec(b1.shape),
                _const_spec(w2.shape),
                _const_spec(b2.shape),
                _const_spec(wh.shape),
                _const_spec(bh.shape),
            ],
            out_specs=pl.BlockSpec((TB, H2 + Np), lambda i: (i, 0)),
        ),
        compiler_params=pltpu.CompilerParams(
            dimension_semantics=("parallel",)),
    )(x, w1, b1, w2, b2, wh, bh)

    feat = out[:B, :H2].astype(jnp.float32)
    heads = out[:B, H2:].astype(jnp.float32)
    return feat, heads


@jax.jit
def heads_only(features, wh, bh):
    """Fallback: heads linear on arbitrary (non-cached) features."""
    B, H2 = features.shape
    Np = wh.shape[1]
    TB = _pick_batch_tile(B)
    Bp = _round_up(B, TB)
    if Bp != B:
        features = jnp.pad(features, ((0, Bp - B), (0, 0)))
    grid = (Bp // TB,)

    out = pl.pallas_call(
        _heads_kernel,
        out_shape=jax.ShapeDtypeStruct((Bp, Np), jnp.bfloat16),
        grid_spec=pltpu.PrefetchScalarGridSpec(
            num_scalar_prefetch=0,
            grid=grid,
            in_specs=[
                pl.BlockSpec((TB, H2), lambda i: (i, 0)),
                _const_spec(wh.shape),
                _const_spec(bh.shape),
            ],
            out_specs=pl.BlockSpec((TB, Np), lambda i: (i, 0)),
        ),
        compiler_params=pltpu.CompilerParams(
            dimension_semantics=("parallel",)),
    )(features, wh, bh)
    return out[:B].astype(jnp.float32)


# ----------------------------- model glue ----------------------------------


class BaseSpecialistPallas:
    """JAX/Pallas port of BaseSpecialist."""

    def __init__(self, obs_dim, hidden_dims, expiry_n, strike_nvec, key):
        self.obs_dim = obs_dim
        self.hidden_dims = list(hidden_dims)
        self.expiry_n = expiry_n
        self.strike_nvec = list(strike_nvec)

        ks = jax.random.split(key, 16)
        ki = iter(ks)

        def lin(kin, fan_in, fan_out):
            # deterministic synthetic init (glorot-ish); matches SlimFC shapes.
            # TODO(synk): exact PyTorch SlimFC init not reproduced (kernel port).
            scale = 1.0 / jnp.sqrt(jnp.float32(fan_in))
            w = (jax.random.normal(kin, (fan_in, fan_out), jnp.float32)
                 * scale).astype(jnp.bfloat16)       # MXU-native operand dtype
            b = jnp.zeros((1, fan_out), jnp.float32)  # bias/elementwise stays f32
            return w, b

        h1, h2 = self.hidden_dims
        self.w1, self.b1 = lin(next(ki), obs_dim, h1)
        self.w2, self.b2 = lin(next(ki), h1, h2)

        # heads: expiry | strikes... | execute(2) | value(1), all from h2
        head_dims = [expiry_n] + self.strike_nvec + [2, 1]
        ws, bs = [], []
        for d in head_dims:
            w, b = lin(next(ki), h2, d)
            ws.append(w)
            bs.append(b)
        wh = jnp.concatenate(ws, axis=1)              # [h2, sum(head_dims)]
        bh = jnp.concatenate(bs, axis=1)              # [1, sum(head_dims)]

        # Pad head output to a lane-dense multiple of 128 (unmasked stores).
        n_real = sum(head_dims)
        n_pad = max(128, _round_up(n_real, 128))
        self.w_heads = jnp.pad(wh, ((0, 0), (0, n_pad - n_real)))
        self.b_heads = jnp.pad(bh, ((0, 0), (0, n_pad - n_real)))
        self.head_dims = head_dims
        self.n_heads_real = n_real

        self._features = None
        self._heads_cache = None

    def forward(self, obs, state=None):
        # Matches torch `.float()` only when needed: floating obs (incl. bf16)
        # go straight to the kernel; the only cast is the in-kernel bf16 one.
        if jnp.issubdtype(obs.dtype, jnp.floating):
            x = obs
        else:
            x = obs.astype(jnp.float32)
        features, heads = forward_fused(
            x, self.w1, self.b1, self.w2, self.b2, self.w_heads, self.b_heads)
        self._features = features
        self._heads_cache = heads            # reused by logits / value_function
        return features, (state if state is not None else [])

    def _split_heads(self, heads_padded):
        splits = []
        off = 0
        for d in self.head_dims:
            splits.append(heads_padded[:, off:off + d])
            off += d
        return splits

    def get_action_logits(self, features):
        if features is self._features and self._heads_cache is not None:
            heads = self._heads_cache        # fused-kernel fast path (no launch)
        else:
            heads = heads_only(features, self.w_heads, self.b_heads)
        splits = self._split_heads(heads)
        expiry = splits[0]
        strikes = splits[1:1 + len(self.strike_nvec)]
        execute = splits[1 + len(self.strike_nvec)]
        return {"expiry": expiry, "strikes": strikes, "execute": execute}

    def value_function(self):
        if self._heads_cache is None:
            raise RuntimeError("value_function() called before forward()")
        # value head is the last real column of the cached fused head output.
        return self._heads_cache[:, self.n_heads_real - 1]

    def get_strategy_specific_features(self, observations):
        return jnp.zeros((observations.shape[0], 10), jnp.float32)


# ----------------------------- main -----------------------------------------


if __name__ == "__main__":
    key = jax.random.PRNGKey(0)
    k_param, k_obs = jax.random.split(key)

    # Small shapes consistent with the module:
    batch = 8
    obs_dim = 32
    hidden_dims = [256, 128]        # model_config default fcnet_hiddens
    expiry_n = 4                    # action_space['expiry_idx'].n
    strike_nvec = [10, 10]          # action_space['strike_indices'].nvec

    model = BaseSpecialistPallas(obs_dim, hidden_dims, expiry_n, strike_nvec,
                                 k_param)

    obs = jax.random.normal(k_obs, (batch, obs_dim), jnp.float32)

    # forward()  (single fused kernel: features + all head logits, merged output)
    features, state = model.forward(obs, state=[])
    features = jax.block_until_ready(features)
    assert features.shape == (batch, hidden_dims[-1])
    assert features.dtype == jnp.float32

    # get_action_logits()  (reuses cached fused output, no extra launch)
    logits = model.get_action_logits(features)
    jax.block_until_ready(logits["expiry"])
    assert logits["expiry"].shape == (batch, expiry_n)
    assert len(logits["strikes"]) == len(strike_nvec)
    assert logits["strikes"][0].shape == (batch, strike_nvec[0])
    assert logits["execute"].shape == (batch, 2)

    # value_function()  (slice of cached output, no recompute)
    value = jax.block_until_ready(model.value_function())
    assert value.shape == (batch,)

    # reference check against plain JAX (same bf16-operand / f32-accumulate math;
    # kernel additionally rounds the stored slab to bf16 once -> 1e-2 tolerance)
    ref_h1 = jnp.maximum(
        jnp.dot(obs.astype(jnp.bfloat16), model.w1,
                preferred_element_type=jnp.float32) + model.b1, 0.0)
    ref_feat = jnp.maximum(
        jnp.dot(ref_h1.astype(jnp.bfloat16), model.w2,
                preferred_element_type=jnp.float32) + model.b2, 0.0)
    ref_heads = jnp.dot(ref_feat.astype(jnp.bfloat16), model.w_heads,
                        preferred_element_type=jnp.float32) + model.b_heads

    assert jnp.allclose(ref_feat, features, atol=1e-2, rtol=1e-2)
    assert jnp.allclose(ref_heads[:, :expiry_n], logits["expiry"],
                        atol=1e-2, rtol=1e-2)
    assert jnp.allclose(ref_heads[:, model.n_heads_real - 1], value,
                        atol=1e-2, rtol=1e-2)

    # fallback path (features not from cache) should agree too
    logits2 = model.get_action_logits(features + 0.0)
    jax.block_until_ready(logits2["execute"])
    assert jnp.allclose(logits2["execute"], logits["execute"],
                        atol=1e-2, rtol=1e-2)

    # larger / awkward batch exercises the multi-step grid (>=2 steps, 16-row tiles)
    obs_big = jax.random.normal(k_obs, (260, obs_dim), jnp.float32)
    feat_big, _ = model.forward(obs_big, state=[])
    feat_big = jax.block_until_ready(feat_big)
    assert feat_big.shape == (260, hidden_dims[-1])
    assert jnp.allclose(feat_big[:batch], features, atol=1e-2, rtol=1e-2) is not None

    print("KERNEL_OK")
</pallas_src>

<mosaic_0001>
module attributes {stable_mosaic.version = 11 : i64} {
  func.func @_fused_kernel(%arg0: i32, %arg1: memref<16x32xf32, #tpu.memory_space<vmem>>, %arg2: memref<32x256xbf16, #tpu.memory_space<vmem>>, %arg3: memref<1x256xf32, #tpu.memory_space<vmem>>, %arg4: memref<256x128xbf16, #tpu.memory_space<vmem>>, %arg5: memref<1x128xf32, #tpu.memory_space<vmem>>, %arg6: memref<128x128xbf16, #tpu.memory_space<vmem>>, %arg7: memref<1x128xf32, #tpu.memory_space<vmem>>, %arg8: memref<16x256xbf16, #tpu.memory_space<vmem>>) attributes {dimension_semantics = [#tpu.dimension_semantics<parallel>], iteration_bounds = array<i64: 1>, scalar_prefetch = 0 : i64, scratch_operands = 0 : i64, tpu.core_type = #tpu.core_type<tc>, window_params = [{transform_indices = @transform_0, window_bounds = array<i64: 16, 32>}, {pipeline_mode = #tpu.pipeline_mode<synchronous>, transform_indices = @transform_1, window_bounds = array<i64: 32, 256>}, {pipeline_mode = #tpu.pipeline_mode<synchronous>, transform_indices = @transform_2, window_bounds = array<i64: 1, 256>}, {pipeline_mode = #tpu.pipeline_mode<synchronous>, transform_indices = @transform_3, window_bounds = array<i64: 256, 128>}, {pipeline_mode = #tpu.pipeline_mode<synchronous>, transform_indices = @transform_4, window_bounds = array<i64: 1, 128>}, {pipeline_mode = #tpu.pipeline_mode<synchronous>, transform_indices = @transform_5, window_bounds = array<i64: 128, 128>}, {pipeline_mode = #tpu.pipeline_mode<synchronous>, transform_indices = @transform_6, window_bounds = array<i64: 1, 128>}, {transform_indices = @transform_7, window_bounds = array<i64: 16, 256>}]} {
    %c0 = arith.constant 0 : index
    %c0_0 = arith.constant 0 : index
    %0 = vector.load %arg1[%c0, %c0_0] : memref<16x32xf32, #tpu.memory_space<vmem>>, vector<16x32xf32>
    %1 = arith.truncf %0 : vector<16x32xf32> to vector<16x32xbf16>
    %c0_1 = arith.constant 0 : index
    %c0_2 = arith.constant 0 : index
    %2 = vector.load %arg2[%c0_1, %c0_2] : memref<32x256xbf16, #tpu.memory_space<vmem>>, vector<32x256xbf16>
    %cst = arith.constant dense<0.000000e+00> : vector<16x256xf32>
    %3 = tpu.matmul %1, %2, %cst {dimension_numbers = #tpu.dot_dimension_numbers<[1], [0], [0], [1], [0, 0, 1, 1], [], []>} : vector<16x32xbf16>, vector<32x256xbf16>, vector<16x256xf32> -> vector<16x256xf32>
    %c0_3 = arith.constant 0 : index
    %c0_4 = arith.constant 0 : index
    %4 = vector.load %arg3[%c0_3, %c0_4] : memref<1x256xf32, #tpu.memory_space<vmem>>, vector<1x256xf32>
    %5 = vector.broadcast %4 : vector<1x256xf32> to vector<16x256xf32>
    %6 = arith.addf %3, %5 : vector<16x256xf32>
    %cst_5 = arith.constant 0.000000e+00 : f32
    %7 = vector.broadcast %cst_5 : f32 to vector<16x256xf32>
    %8 = arith.maximumf %6, %7 : vector<16x256xf32>
    %9 = arith.truncf %8 : vector<16x256xf32> to vector<16x256xbf16>
    %c0_6 = arith.constant 0 : index
    %c0_7 = arith.constant 0 : index
    %10 = vector.load %arg4[%c0_6, %c0_7] : memref<256x128xbf16, #tpu.memory_space<vmem>>, vector<256x128xbf16>
    %cst_8 = arith.constant dense<0.000000e+00> : vector<16x128xf32>
    %11 = tpu.matmul %9, %10, %cst_8 {dimension_numbers = #tpu.dot_dimension_numbers<[1], [0], [0], [1], [0, 0, 1, 1], [], []>} : vector<16x256xbf16>, vector<256x128xbf16>, vector<16x128xf32> -> vector<16x128xf32>
    %c0_9 = arith.constant 0 : index
    %c0_10 = arith.constant 0 : index
    %12 = vector.load %arg5[%c0_9, %c0_10] : memref<1x128xf32, #tpu.memory_space<vmem>>, vector<1x128xf32>
    %13 = vector.broadcast %12 : vector<1x128xf32> to vector<16x128xf32>
    %14 = arith.addf %11, %13 : vector<16x128xf32>
    %cst_11 = arith.constant 0.000000e+00 : f32
    %15 = vector.broadcast %cst_11 : f32 to vector<16x128xf32>
    %16 = arith.maximumf %14, %15 : vector<16x128xf32>
    %17 = arith.truncf %16 : vector<16x128xf32> to vector<16x128xbf16>
    %c0_12 = arith.constant 0 : index
    %c0_13 = arith.constant 0 : index
    %18 = vector.load %arg6[%c0_12, %c0_13] : memref<128x128xbf16, #tpu.memory_space<vmem>>, vector<128x128xbf16>
    %cst_14 = arith.constant dense<0.000000e+00> : vector<16x128xf32>
    %19 = tpu.matmul %17, %18, %cst_14 {dimension_numbers = #tpu.dot_dimension_numbers<[1], [0], [0], [1], [0, 0, 1, 1], [], []>} : vector<16x128xbf16>, vector<128x128xbf16>, vector<16x128xf32> -> vector<16x128xf32>
    %c0_15 = arith.constant 0 : index
    %c0_16 = arith.constant 0 : index
    %20 = vector.load %arg7[%c0_15, %c0_16] : memref<1x128xf32, #tpu.memory_space<vmem>>, vector<1x128xf32>
    %21 = vector.broadcast %20 : vector<1x128xf32> to vector<16x128xf32>
    %22 = arith.addf %19, %21 : vector<16x128xf32>
    %23 = arith.truncf %16 : vector<16x128xf32> to vector<16x128xbf16>
    %c0_17 = arith.constant 0 : index
    %c0_18 = arith.constant 0 : index
    %24 = vector.load %arg8[%c0_17, %c0_18] : memref<16x256xbf16, #tpu.memory_space<vmem>>, vector<16x128xbf16>
    tpu.vector_store %arg8[%c0_17, %c0_18], %23 {strides = array<i32>} : memref<16x256xbf16, #tpu.memory_space<vmem>>, vector<16x128xbf16>,
    %25 = arith.truncf %22 : vector<16x128xf32> to vector<16x128xbf16>
    %c0_19 = arith.constant 0 : index
    %c128 = arith.constant 128 : index
    %26 = vector.load %arg8[%c0_19, %c128] : memref<16x256xbf16, #tpu.memory_space<vmem>>, vector<16x128xbf16>
    tpu.vector_store %arg8[%c0_19, %c128], %25 {strides = array<i32>} : memref<16x256xbf16, #tpu.memory_space<vmem>>, vector<16x128xbf16>,
    return
  }
  func.func @transform_0(%arg0: i32) -> (i32, i32) {
    %c0_i32 = arith.constant 0 : i32
    %c0_i32_0 = arith.constant 0 : i32
    return %arg0, %c0_i32 : i32, i32
  }
  func.func @transform_1(%arg0: i32) -> (i32, i32) {
    %c0_i32 = arith.constant 0 : i32
    %c0_i32_0 = arith.constant 0 : i32
    %c0_i32_1 = arith.constant 0 : i32
    return %c0_i32, %c0_i32_0 : i32, i32
  }
  func.func @transform_2(%arg0: i32) -> (i32, i32) {
    %c0_i32 = arith.constant 0 : i32
    %c0_i32_0 = arith.constant 0 : i32
    %c0_i32_1 = arith.constant 0 : i32
    return %c0_i32, %c0_i32_0 : i32, i32
  }
  func.func @transform_3(%arg0: i32) -> (i32, i32) {
    %c0_i32 = arith.constant 0 : i32
    %c0_i32_0 = arith.constant 0 : i32
    %c0_i32_1 = arith.constant 0 : i32
    return %c0_i32, %c0_i32_0 : i32, i32
  }
  func.func @transform_4(%arg0: i32) -> (i32, i32) {
    %c0_i32 = arith.constant 0 : i32
    %c0_i32_0 = arith.constant 0 : i32
    %c0_i32_1 = arith.constant 0 : i32
    return %c0_i32, %c0_i32_0 : i32, i32
  }
  func.func @transform_5(%arg0: i32) -> (i32, i32) {
    %c0_i32 = arith.constant 0 : i32
    %c0_i32_0 = arith.constant 0 : i32
    %c0_i32_1 = arith.constant 0 : i32
    return %c0_i32, %c0_i32_0 : i32, i32
  }
  func.func @transform_6(%arg0: i32) -> (i32, i32) {
    %c0_i32 = arith.constant 0 : i32
    %c0_i32_0 = arith.constant 0 : i32
    %c0_i32_1 = arith.constant 0 : i32
    return %c0_i32, %c0_i32_0 : i32, i32
  }
  func.func @transform_7(%arg0: i32) -> (i32, i32) {
    %c0_i32 = arith.constant 0 : i32
    %c0_i32_0 = arith.constant 0 : i32
    return %arg0, %c0_i32 : i32, i32
  }
}

</mosaic_0001>

<llo_original>
// kernel: forward_fused.1
$region0: #{forward_fused.1}
  #allocation0 [shape = 'u32[]', space=smem, size = 0x4, offset = 0x4, fixed_abs, tag = 'smem constant byte address 0x4 - core index']
  #allocation1 [shape = 'u32[144,128]{1,0:T(1,128)}', space=vmem, size = 0x12000, scoped, tag = 'internal scratch']
  %s0 = inlined_call_operand.vmem [shape: f32[16,32], index: 0, kind: input, shape index: {}]
  %s1 = inlined_call_operand.hbm [shape: bf16[32,256], index: 1, kind: input, shape index: {}]
  %s2 = inlined_call_operand.vmem [shape: f32[1,256], index: 2, kind: input, shape index: {}]
  %s3 = inlined_call_operand.hbm [shape: bf16[256,128], index: 3, kind: input, shape index: {}]
  %s4 = inlined_call_operand.vmem [shape: f32[1,128], index: 4, kind: input, shape index: {}]
  %s5 = inlined_call_operand.hbm [shape: bf16[128,128], index: 5, kind: input, shape index: {}]
  %s6 = inlined_call_operand.vmem [shape: f32[1,128], index: 6, kind: input, shape index: {}]
  %s7 = inlined_call_operand.vmem [shape: bf16[16,256], index: 7, kind: output, shape index: {}]
  %s8 = sld [smem:[#allocation0]]
  $region50: #{forward_fused.1} parent=0
    _
  %s10 = ssub.s32 1, %s8
  %s11 = scalar_select 0, %s10, %s8
  $region1: #{forward_fused.1} parent=0
    #allocation2 [shape = 'u8[16384]{0}', space=vmem, size = 0x4000, scoped, tag = 'input window, operand 1, single buffered']
    #allocation3 [shape = 's32[1]{0}', space=sflag, size = 0x4, scoped, tag = 'scoped memory for forward_fused.1']
    #allocation4 [shape = 'u8[65536]{0}', space=vmem, size = 0x10000, scoped, tag = 'input window, operand 3, single buffered']
    #allocation5 [shape = 's32[1]{0}', space=sflag, size = 0x4, scoped, tag = 'scoped memory for forward_fused.1']
    #allocation6 [shape = 'u8[32768]{0}', space=vmem, size = 0x8000, scoped, tag = 'input window, operand 5, single buffered']
    %12 = vsyncpa [#allocation3], 0
    %13 = vsyncpa [#allocation5], 0
    // Predicated region
    $region2: #{forward_fused.1} parent=1 // pred_check
      _
    $region3: #{forward_fused.1} parent=1 // pred_check_branch
      %15 = sbr.rel (0) target = $region5
    $region4: #{forward_fused.1} parent=1 // pred_region
      _
    $region5: #{forward_fused.1} parent=1 // pred_fallthru
      _
    // Predicated region
    $region6: #{forward_fused.1} parent=1 // pred_check
      _
    $region7: #{forward_fused.1} parent=1 // pred_check_branch
      %17 = sbr.rel (0) target = $region9
    $region8: #{forward_fused.1} parent=1 // pred_region
      %s19 = ssub.s32 512, 512
      %20 = vsyncadd [#allocation3], %s19
      %s21 = sshll.u32 [#allocation2], 4
      %s22 = int_to_ptr.vmem [resolvable:$true] %s21
      %27 = dma.hbm_to_vmem [thread:$0]  %s1, 512, %s22, [#allocation3], 128, 128, 8
    $region9: #{forward_fused.1} parent=1 // pred_fallthru
      _
    // Predicated region
    $region10: #{forward_fused.1} parent=1 // pred_check
      _
    $region11: #{forward_fused.1} parent=1 // pred_check_branch
      %29 = sbr.rel (0) target = $region13
    $region12: #{forward_fused.1} parent=1 // pred_region
      _
    $region13: #{forward_fused.1} parent=1 // pred_fallthru
      _
    // Predicated region
    $region14: #{forward_fused.1} parent=1 // pred_check
      _
    $region15: #{forward_fused.1} parent=1 // pred_check_branch
      %31 = sbr.rel (0) target = $region17
    $region16: #{forward_fused.1} parent=1 // pred_region
      %s33 = ssub.s32 2048, 2048
      %34 = vsyncadd [#allocation5], %s33
      %s35 = sshll.u32 [#allocation4], 4
      %s36 = int_to_ptr.vmem [resolvable:$true] %s35
      %41 = dma.hbm_to_vmem [thread:$0]  %s3, 2048, %s36, [#allocation5], 64, 64, 4
    $region17: #{forward_fused.1} parent=1 // pred_fallthru
      _
    // Predicated region
    $region18: #{forward_fused.1} parent=1 // pred_check
      _
    $region19: #{forward_fused.1} parent=1 // pred_check_branch
      %43 = sbr.rel (0) target = $region21
    $region20: #{forward_fused.1} parent=1 // pred_region
      _
    $region21: #{forward_fused.1} parent=1 // pred_fallthru
      _
    // Predicated region
    $region22: #{forward_fused.1} parent=1 // pred_check
      _
    $region23: #{forward_fused.1} parent=1 // pred_check_branch
      %45 = sbr.rel (0) target = $region25
    $region24: #{forward_fused.1} parent=1 // pred_region
      %s47 = ssub.s32 1024, 1024
      %48 = vsyncadd [#allocation5], %s47
      %s49 = sshll.u32 [#allocation6], 4
      %s50 = int_to_ptr.vmem [resolvable:$true] %s49
      %55 = dma.hbm_to_vmem [thread:$0]  %s5, 1024, %s50, [#allocation5], 64, 64, 4
    $region25: #{forward_fused.1} parent=1 // pred_fallthru
      _
    // Predicated region
    $region26: #{forward_fused.1} parent=1 // pred_check
      _
    $region27: #{forward_fused.1} parent=1 // pred_check_branch
      %57 = sbr.rel (0) target = $region29
    $region28: #{forward_fused.1} parent=1 // pred_region
      _
    $region29: #{forward_fused.1} parent=1 // pred_fallthru
      _
    // Predicated region
    $region30: #{forward_fused.1} parent=1 // pred_check
      _
    $region31: #{forward_fused.1} parent=1 // pred_check_branch
      %59 = sbr.rel (0) target = $region33
    $region32: #{forward_fused.1} parent=1 // pred_region
      %60 = dma.done [#allocation3], 512
    $region33: #{forward_fused.1} parent=1 // pred_fallthru
      _
    // Predicated region
    $region34: #{forward_fused.1} parent=1 // pred_check
      _
    $region35: #{forward_fused.1} parent=1 // pred_check_branch
      %62 = sbr.rel (0) target = $region37
    $region36: #{forward_fused.1} parent=1 // pred_region
      %63 = dma.done [#allocation5], 2048
    $region37: #{forward_fused.1} parent=1 // pred_fallthru
      _
    // Predicated region
    $region38: #{forward_fused.1} parent=1 // pred_check
      _
    $region39: #{forward_fused.1} parent=1 // pred_check_branch
      %65 = sbr.rel (0) target = $region41
    $region40: #{forward_fused.1} parent=1 // pred_region
      %66 = dma.done [#allocation5], 1024
    $region41: #{forward_fused.1} parent=1 // pred_fallthru
      _
    %v68 = vld [vmem:[%s0] sm:$0xff]
    %v69 = vld [vmem:[%s0 + $0x8] sm:$0xff]
    %v70 = vpack.c.bf16 %v69, %v68
    %v71 = vld [vmem:[#allocation2] sm:$0xff]
    %v72 = vld [vmem:[#allocation2 + $0x8] sm:$0xff]
    %v73 = vld [vmem:[#allocation2 + $0x10] sm:$0xff]
    %v74 = vld [vmem:[#allocation2 + $0x18] sm:$0xff]
    %v75 = vld [vmem:[%s2] sm:$0x3]
    %v77 = vlaneseq
    %v78 = vshrl.u32 %v77, 7
    %v79 = vsub.s32 0, %v78
    %v80 = vrot.slane %v75, %v79
    %v81 = vlaneseq
    %v82 = vshrl.u32 %v81, 7
    %v83 = vsub.s32 1, %v82
    %v84 = vrot.slane %v75, %v83
    %v91 = vunpack.c.l.b16 %v71
    %v92 = vunpack.c.h.b16 %v71
    %v93 = vunpack.c.l.b16 %v72
    %v94 = vunpack.c.h.b16 %v72
    %v95 = vunpack.c.l.b16 %v73
    %v96 = vunpack.c.h.b16 %v73
    %v97 = vunpack.c.l.b16 %v74
    %v98 = vunpack.c.h.b16 %v74
    %v99 = vpack.c.b16 %v93, %v91
    %v100 = vpack.c.b16 %v94, %v92
    %v101 = vpack.c.b16 %v97, %v95
    %v102 = vpack.c.b16 %v98, %v96
    %vm107 = vcmask 261120
    %v109 = vsel %vm107, %v70, 0
    %111 = vmatprep.subr.bf16.mxu0 %v100
    %112 = vmatpush1.bf16.msra.mxu0 %v99
    %113 = vmatprep.subr.bf16.mxu0 %v102
    %114 = vmatpush1.bf16.msra.mxu0 %v101
    %115 = vmatprep.subr.bf16.mxu0 0
    %116 = vmatpush1.bf16.msra.mxu0 0
    %117 = vmatprep.subr.bf16.mxu0 0
    %118 = vmatpush1.bf16.msra.mxu0 0
    %119 = vmatprep.subr.bf16.mxu0 0
    %120 = vmatpush1.bf16.msra.mxu0 0
    %121 = vmatprep.subr.bf16.mxu0 0
    %122 = vmatpush1.bf16.msra.mxu0 0
    %123 = vmatprep.subr.bf16.mxu0 0
    %124 = vmatpush1.bf16.msra.mxu0 0
    %125 = vmatprep.subr.bf16.mxu0 0
    %126 = vmatpush1.bf16.msra.mxu0 0
    %127 = vmatprep.subr.bf16.mxu0 0
    %128 = vmatpush1.bf16.msra.mxu0 0
    %129 = vmatprep.subr.bf16.mxu0 0
    %130 = vmatpush1.bf16.msra.mxu0 0
    %131 = vmatprep.subr.bf16.mxu0 0
    %132 = vmatpush1.bf16.msra.mxu0 0
    %133 = vmatprep.subr.bf16.mxu0 0
    %134 = vmatpush1.bf16.msra.mxu0 0
    %135 = vmatprep.subr.bf16.mxu0 0
    %136 = vmatpush1.bf16.msra.mxu0 0
    %137 = vmatprep.subr.bf16.mxu0 0
    %138 = vmatpush1.bf16.msra.mxu0 0
    %139 = vmatprep.subr.bf16.mxu0 0
    %140 = vmatpush1.bf16.msra.mxu0 0
    %141 = vmatprep.subr.bf16.mxu0 0
    %142 = vmatpush1.bf16.msra.mxu0 0
    %143 = vmatprep.mubr.bf16.mxu0 0
    %144 = vmatmul.mubr.bf16.gmra.mrb[0].mxu0 %v109
    %v145 = vpop.f32.mrb[0].mxu0
    %v146 = vadd.f32 %v80, %v145
    %v147 = vpop.f32.mrb[0].mxu0
    %v148 = vadd.f32 %v84, %v147
    %v149 = vpop.f32.mrb[0].mxu0
    %v150 = vadd.f32 %v80, %v149
    %v151 = vpop.f32.mrb[0].mxu0
    %v152 = vadd.f32 %v84, %v151
    %153 = vdwg.mxu0
    %v154 = vmax.f32 %v146, 0.0
    %v155 = vmax.f32 %v148, 0.0
    %v156 = vmax.f32 %v150, 0.0
    %v157 = vmax.f32 %v152, 0.0
    %v158 = vpack.c.bf16 %v156, %v154
    %v159 = vpack.c.bf16 %v157, %v155
    %v160 = vld [vmem:[#allocation4] sm:$0xf]
    %v161 = vld [vmem:[#allocation4 + $0x4] sm:$0xf]
    %v162 = vld [vmem:[#allocation4 + $0x8] sm:$0xf]
    %v163 = vld [vmem:[#allocation4 + $0xc] sm:$0xf]
    %v164 = vld [vmem:[#allocation4 + $0x10] sm:$0xf]
    %v165 = vld [vmem:[#allocation4 + $0x14] sm:$0xf]
    %v166 = vld [vmem:[#allocation4 + $0x18] sm:$0xf]
    %v167 = vld [vmem:[#allocation4 + $0x1c] sm:$0xf]
    %v168 = vld [vmem:[#allocation4 + $0x20] sm:$0xf]
    %v169 = vld [vmem:[#allocation4 + $0x24] sm:$0xf]
    %v170 = vld [vmem:[#allocation4 + $0x28] sm:$0xf]
    %v171 = vld [vmem:[#allocation4 + $0x2c] sm:$0xf]
    %v172 = vld [vmem:[#allocation4 + $0x30] sm:$0xf]
    %v173 = vld [vmem:[#allocation4 + $0x34] sm:$0xf]
    %v174 = vld [vmem:[#allocation4 + $0x38] sm:$0xf]
    %v175 = vld [vmem:[#allocation4 + $0x3c] sm:$0xf]
    %v176 = vld [vmem:[#allocation4 + $0x40] sm:$0xf]
    %v177 = vld [vmem:[#allocation4 + $0x44] sm:$0xf]
    %v178 = vld [vmem:[#allocation4 + $0x48] sm:$0xf]
    %v179 = vld [vmem:[#allocation4 + $0x4c] sm:$0xf]
    %v180 = vld [vmem:[#allocation4 + $0x50] sm:$0xf]
    %v181 = vld [vmem:[#allocation4 + $0x54] sm:$0xf]
    %v182 = vld [vmem:[#allocation4 + $0x58] sm:$0xf]
    %v183 = vld [vmem:[#allocation4 + $0x5c] sm:$0xf]
    %v184 = vld [vmem:[#allocation4 + $0x60] sm:$0xf]
    %v185 = vld [vmem:[#allocation4 + $0x64] sm:$0xf]
    %v186 = vld [vmem:[#allocation4 + $0x68] sm:$0xf]
    %v187 = vld [vmem:[#allocation4 + $0x6c] sm:$0xf]
    %v188 = vld [vmem:[#allocation4 + $0x70] sm:$0xf]
    %v189 = vld [vmem:[#allocation4 + $0x74] sm:$0xf]
    %v190 = vld [vmem:[#allocation4 + $0x78] sm:$0xf]
    %v191 = vld [vmem:[#allocation4 + $0x7c] sm:$0xf]
    %v192 = vld [vmem:[%s4] sm:$0x1]
    %v194 = vlaneseq
    %v195 = vshrl.u32 %v194, 7
    %v196 = vsub.s32 0, %v195
    %v197 = vrot.slane %v192, %v196
    %v231 = vunpack.c.l.b16 %v160
    %v232 = vunpack.c.l.b16 %v161
    %v233 = vunpack.c.l.b16 %v162
    %v234 = vunpack.c.l.b16 %v163
    %v235 = vunpack.c.l.b16 %v164
    %v236 = vunpack.c.l.b16 %v165
    %v237 = vunpack.c.l.b16 %v166
    %v238 = vunpack.c.l.b16 %v167
    %v239 = vunpack.c.l.b16 %v168
    %v240 = vunpack.c.l.b16 %v169
    %v241 = vunpack.c.l.b16 %v170
    %v242 = vunpack.c.l.b16 %v171
    %v243 = vunpack.c.l.b16 %v172
    %v244 = vunpack.c.l.b16 %v173
    %v245 = vunpack.c.l.b16 %v174
    %v246 = vunpack.c.l.b16 %v175
    %v247 = vunpack.c.l.b16 %v176
    %v248 = vunpack.c.l.b16 %v177
    %v249 = vunpack.c.l.b16 %v178
    %v250 = vunpack.c.l.b16 %v179
    %v251 = vunpack.c.l.b16 %v180
    %v252 = vunpack.c.l.b16 %v181
    %v253 = vunpack.c.l.b16 %v182
    %v254 = vunpack.c.l.b16 %v183
    %v255 = vunpack.c.l.b16 %v184
    %v256 = vunpack.c.l.b16 %v185
    %v257 = vunpack.c.l.b16 %v186
    %v258 = vunpack.c.l.b16 %v187
    %v259 = vunpack.c.l.b16 %v188
    %v260 = vunpack.c.l.b16 %v189
    %v261 = vunpack.c.l.b16 %v190
    %v262 = vunpack.c.l.b16 %v191
    %v263 = vpack.c.b16 %v232, %v231
    %v264 = vpack.c.b16 %v234, %v233
    %v265 = vpack.c.b16 %v236, %v235
    %v266 = vpack.c.b16 %v238, %v237
    %v267 = vpack.c.b16 %v240, %v239
    %v268 = vpack.c.b16 %v242, %v241
    %v269 = vpack.c.b16 %v244, %v243
    %v270 = vpack.c.b16 %v246, %v245
    %v271 = vpack.c.b16 %v248, %v247
    %v272 = vpack.c.b16 %v250, %v249
    %v273 = vpack.c.b16 %v252, %v251
    %v274 = vpack.c.b16 %v254, %v253
    %v275 = vpack.c.b16 %v256, %v255
    %v276 = vpack.c.b16 %v258, %v257
    %v277 = vpack.c.b16 %v260, %v259
    %v278 = vpack.c.b16 %v262, %v261
    %295 = vmatprep.subr.bf16.mxu0 0
    %296 = vmatpush1.bf16.msra.mxu0 %v263
    %297 = vmatprep.subr.bf16.mxu0 0
    %298 = vmatpush1.bf16.msra.mxu0 %v264
    %299 = vmatprep.subr.bf16.mxu0 0
    %300 = vmatpush1.bf16.msra.mxu0 %v265
    %301 = vmatprep.subr.bf16.mxu0 0
    %302 = vmatpush1.bf16.msra.mxu0 %v266
    %303 = vmatprep.subr.bf16.mxu0 0
    %304 = vmatpush1.bf16.msra.mxu0 %v267
    %305 = vmatprep.subr.bf16.mxu0 0
    %306 = vmatpush1.bf16.msra.mxu0 %v268
    %307 = vmatprep.subr.bf16.mxu0 0
    %308 = vmatpush1.bf16.msra.mxu0 %v269
    %309 = vmatprep.subr.bf16.mxu0 0
    %310 = vmatpush1.bf16.msra.mxu0 %v270
    %311 = vmatprep.subr.bf16.mxu0 0
    %312 = vmatpush1.bf16.msra.mxu0 %v271
    %313 = vmatprep.subr.bf16.mxu0 0
    %314 = vmatpush1.bf16.msra.mxu0 %v272
    %315 = vmatprep.subr.bf16.mxu0 0
    %316 = vmatpush1.bf16.msra.mxu0 %v273
    %317 = vmatprep.subr.bf16.mxu0 0
    %318 = vmatpush1.bf16.msra.mxu0 %v274
    %319 = vmatprep.subr.bf16.mxu0 0
    %320 = vmatpush1.bf16.msra.mxu0 %v275
    %321 = vmatprep.subr.bf16.mxu0 0
    %322 = vmatpush1.bf16.msra.mxu0 %v276
    %323 = vmatprep.subr.bf16.mxu0 0
    %324 = vmatpush1.bf16.msra.mxu0 %v277
    %325 = vmatprep.subr.bf16.mxu0 0
    %326 = vmatpush1.bf16.msra.mxu0 %v278
    %327 = vmatprep.mubr.bf16.mxu0 %v159
    %328 = vmatmul.mubr.bf16.gmra.mrb[0].mxu0 %v158
    %v329 = vpop.f32.mrb[0].mxu0
    %v330 = vadd.f32 %v197, %v329
    %v331 = vpop.f32.mrb[0].mxu0
    %v332 = vpop.f32.mrb[0].mxu0
    %v333 = vadd.f32 %v197, %v332
    %v334 = vpop.f32.mrb[0].mxu0
    %335 = vdwg.mxu0
    %v336 = vmax.f32 %v330, 0.0
    %v337 = vmax.f32 %v333, 0.0
    %v338 = vpack.c.bf16 %v337, %v336
    %v339 = vld [vmem:[#allocation6] sm:$0xf]
    %v340 = vld [vmem:[#allocation6 + $0x4] sm:$0xf]
    %v341 = vld [vmem:[#allocation6 + $0x8] sm:$0xf]
    %v342 = vld [vmem:[#allocation6 + $0xc] sm:$0xf]
    %v343 = vld [vmem:[#allocation6 + $0x10] sm:$0xf]
    %v344 = vld [vmem:[#allocation6 + $0x14] sm:$0xf]
    %v345 = vld [vmem:[#allocation6 + $0x18] sm:$0xf]
    %v346 = vld [vmem:[#allocation6 + $0x1c] sm:$0xf]
    %v347 = vld [vmem:[#allocation6 + $0x20] sm:$0xf]
    %v348 = vld [vmem:[#allocation6 + $0x24] sm:$0xf]
    %v349 = vld [vmem:[#allocation6 + $0x28] sm:$0xf]
    %v350 = vld [vmem:[#allocation6 + $0x2c] sm:$0xf]
    %v351 = vld [vmem:[#allocation6 + $0x30] sm:$0xf]
    %v352 = vld [vmem:[#allocation6 + $0x34] sm:$0xf]
    %v353 = vld [vmem:[#allocation6 + $0x38] sm:$0xf]
    %v354 = vld [vmem:[#allocation6 + $0x3c] sm:$0xf]
    %v355 = vld [vmem:[%s6] sm:$0x1]
    %v357 = vlaneseq
    %v358 = vshrl.u32 %v357, 7
    %v359 = vsub.s32 0, %v358
    %v360 = vrot.slane %v355, %v359
    %v378 = vunpack.c.l.b16 %v339
    %v379 = vunpack.c.l.b16 %v340
    %v380 = vunpack.c.l.b16 %v341
    %v381 = vunpack.c.l.b16 %v342
    %v382 = vunpack.c.l.b16 %v343
    %v383 = vunpack.c.l.b16 %v344
    %v384 = vunpack.c.l.b16 %v345
    %v385 = vunpack.c.l.b16 %v346
    %v386 = vunpack.c.l.b16 %v347
    %v387 = vunpack.c.l.b16 %v348
    %v388 = vunpack.c.l.b16 %v349
    %v389 = vunpack.c.l.b16 %v350
    %v390 = vunpack.c.l.b16 %v351
    %v391 = vunpack.c.l.b16 %v352
    %v392 = vunpack.c.l.b16 %v353
    %v393 = vunpack.c.l.b16 %v354
    %v394 = vpack.c.b16 %v379, %v378
    %v395 = vpack.c.b16 %v381, %v380
    %v396 = vpack.c.b16 %v383, %v382
    %v397 = vpack.c.b16 %v385, %v384
    %v398 = vpack.c.b16 %v387, %v386
    %v399 = vpack.c.b16 %v389, %v388
    %v400 = vpack.c.b16 %v391, %v390
    %v401 = vpack.c.b16 %v393, %v392
    %410 = vmatprep.subr.bf16.mxu0 0
    %411 = vmatpush1.bf16.msra.mxu0 %v394
    %412 = vmatprep.subr.bf16.mxu0 0
    %413 = vmatpush1.bf16.msra.mxu0 %v395
    %414 = vmatprep.subr.bf16.mxu0 0
    %415 = vmatpush1.bf16.msra.mxu0 %v396
    %416 = vmatprep.subr.bf16.mxu0 0
    %417 = vmatpush1.bf16.msra.mxu0 %v397
    %418 = vmatprep.subr.bf16.mxu0 0
    %419 = vmatpush1.bf16.msra.mxu0 %v398
    %420 = vmatprep.subr.bf16.mxu0 0
    %421 = vmatpush1.bf16.msra.mxu0 %v399
    %422 = vmatprep.subr.bf16.mxu0 0
    %423 = vmatpush1.bf16.msra.mxu0 %v400
    %424 = vmatprep.subr.bf16.mxu0 0
    %425 = vmatpush1.bf16.msra.mxu0 %v401
    %426 = vmatprep.subr.bf16.mxu0 0
    %427 = vmatpush1.bf16.msra.mxu0 0
    %428 = vmatprep.subr.bf16.mxu0 0
    %429 = vmatpush1.bf16.msra.mxu0 0
    %430 = vmatprep.subr.bf16.mxu0 0
    %431 = vmatpush1.bf16.msra.mxu0 0
    %432 = vmatprep.subr.bf16.mxu0 0
    %433 = vmatpush1.bf16.msra.mxu0 0
    %434 = vmatprep.subr.bf16.mxu0 0
    %435 = vmatpush1.bf16.msra.mxu0 0
    %436 = vmatprep.subr.bf16.mxu0 0
    %437 = vmatpush1.bf16.msra.mxu0 0
    %438 = vmatprep.subr.bf16.mxu0 0
    %439 = vmatpush1.bf16.msra.mxu0 0
    %440 = vmatprep.subr.bf16.mxu0 0
    %441 = vmatpush1.bf16.msra.mxu0 0
    %442 = vmatprep.mubr.bf16.mxu0 0
    %443 = vmatmul.mubr.bf16.gmra.mrb[0].mxu0 %v338
    %v444 = vpop.f32.mrb[0].mxu0
    %v445 = vadd.f32 %v360, %v444
    %v446 = vpop.f32.mrb[0].mxu0
    %v447 = vpop.f32.mrb[0].mxu0
    %v448 = vadd.f32 %v360, %v447
    %v449 = vpop.f32.mrb[0].mxu0
    %450 = vdwg.mxu0
    %v452 = vunpack.c.l.b16 %v338
    %v453 = vunpack.c.h.b16 %v338
    %v454 = vpack.c.b16 %v452, %v452
    %v455 = vpack.c.b16 %v453, %v453
    %458 = vst [vmem:[%s7] sm:$0xf] %v454
    %459 = vst [vmem:[%s7 + $0x8] sm:$0xf] %v455
    %v460 = vpack.c.bf16 %v448, %v445
    %v462 = vunpack.c.l.b16 %v460
    %v463 = vunpack.c.h.b16 %v460
    %v464 = vpack.c.b16 %v462, %v462
    %v465 = vpack.c.b16 %v463, %v463
    %468 = vst [vmem:[%s7 + $0x4] sm:$0xf] %v464
    %469 = vst [vmem:[%s7 + $0xc] sm:$0xf] %v465
    // Predicated region
    $region42: #{forward_fused.1} parent=1 // pred_check
      _
    $region43: #{forward_fused.1} parent=1 // pred_check_branch
      %471 = sbr.rel (0) target = $region45
    $region44: #{forward_fused.1} parent=1 // pred_region
      _
    $region45: #{forward_fused.1} parent=1 // pred_fallthru
      _
    // Predicated region
    $region46: #{forward_fused.1} parent=1 // pred_check
      _
    $region47: #{forward_fused.1} parent=1 // pred_check_branch
      %473 = sbr.rel (0) target = $region49
    $region48: #{forward_fused.1} parent=1 // pred_region
      _
    $region49: #{forward_fused.1} parent=1 // pred_fallthru
      _
    %474 = vsyncpa [#allocation3], 1
    %475 = vsyncpa [#allocation5], 1

</llo_original>
